<compile_context>
chip_gen: v7x
topology: tpu7x:2x2x1
jax: 0.10.0
libtpu: 0.0.40
codegen_flags: <defaults>
</compile_context>

<pallas_src>
import jax
import jax.numpy as jnp
from jax.experimental import pallas as pl
from jax.experimental.pallas import tpu as pltpu


def _round_up(n: int, m: int) -> int:
    return ((n + m - 1) // m) * m


def _pack_factor(d: int):
    """Return (d_padded, pack) with d_padded >= d and d_padded * pack a multiple
    of 128, so `pack` consecutive x-rows fill one 128-lane register row."""
    if d <= 128:
        dp = 1
        while dp < d:           # smallest power-of-two divisor of 128 that is >= d
            dp *= 2
        return dp, 128 // dp
    return _round_up(d, 128), 1


def ffnet0_kernel(x_ref, wp_ref, b_ref, o_ref):
    # x_ref : (TBP, P*Dp) packed input tile (lane-dense, contiguous DMA)
    # wp_ref: (P*Dp, P)   block-diagonal packed weight (constant block, resident)
    # b_ref : (1,)        bias scalar in SMEM
    # o_ref : (TBP, P)    packed output tile (reshaped to (B,1) outside)
    z = jnp.dot(x_ref[...], wp_ref[...], preferred_element_type=jnp.float32)  # MXU
    z = z + b_ref[0]                                                          # SMEM scalar
    # sigmoid(z) = 1 / (1 + exp(-z)); approx reciprocal stays on the EUP path.
    o_ref[...] = pl.reciprocal(1.0 + jnp.exp(-z), approx=True).astype(o_ref.dtype)


def ffnet0_forward(x, weight, bias, *, block_rows=32768):
    """x: (B, D) f32; weight: (1, D) f32 (PyTorch nn.Linear layout); bias: (1,).

    Returns sigmoid(x @ weight.T + bias) with shape (B, 1), float32.
    """
    B, D = x.shape
    x = x.astype(jnp.float32)
    w = weight.reshape(-1).astype(jnp.float32)
    b_vec = bias.reshape(1).astype(jnp.float32)

    dp, pack = _pack_factor(D)        # for D=32: dp=32, pack=4
    lanes = dp * pack                 # 128 whenever D <= 128

    # ---- tile size in *packed* rows (1 packed row == `pack` original rows) ----
    desired = max(8, _round_up(max(1, block_rows // pack), 8))
    rows_packed = pl.cdiv(B, pack)
    # Keep >= ~8 grid steps for large batches so v7x's two TensorCores balance.
    cap = max(8, _round_up(pl.cdiv(rows_packed, 8), 8))
    tbp = min(desired, cap)

    # ---- pad batch so packed rows divide the tile; pad features to dp ----
    b_pad = _round_up(B, pack * tbp)
    x = jnp.pad(x, ((0, b_pad - B), (0, dp - D)))   # padded rows -> sigmoid(bias), sliced off
    x_packed = x.reshape(b_pad // pack, lanes)      # free metadata reshape (row-major)

    # ---- block-diagonal packed weight: wp[p*dp + d, j] = w[d] iff p == j ----
    w_pad = jnp.pad(w, (0, dp - D))
    eye = jnp.eye(pack, dtype=jnp.float32)
    wp = (eye[:, None, :] * w_pad[None, :, None]).reshape(lanes, pack)

    grid = (b_pad // pack // tbp,)

    out_packed = pl.pallas_call(
        ffnet0_kernel,
        out_shape=jax.ShapeDtypeStruct((b_pad // pack, pack), jnp.float32),
        grid_spec=pltpu.PrefetchScalarGridSpec(
            num_scalar_prefetch=0,
            grid=grid,
            in_specs=[
                pl.BlockSpec((tbp, lanes), lambda i: (i, 0)),       # packed input tile
                pl.BlockSpec((lanes, pack), lambda i: (0, 0)),      # packed weight (fetched once)
                pl.BlockSpec(memory_space=pltpu.MemorySpace.SMEM),  # bias scalar
            ],
            out_specs=pl.BlockSpec((tbp, pack), lambda i: (i, 0)),
        ),
        compiler_params=pltpu.CompilerParams(
            dimension_semantics=("parallel",),       # batch tiles independent (megacore)
            vmem_limit_bytes=48 * 1024 * 1024,       # ~16 MiB used at default tiles; v7x-safe
        ),
    )(x_packed, wp, b_vec)

    return out_packed.reshape(b_pad, 1)[:B]


if __name__ == "__main__":
    # Small demo shape consistent with the module (input_size=32). B is chosen
    # non-divisible so the run exercises padding, the packed reshape, and
    # multi-step pipelining (block_rows=512 -> 8 grid steps here).
    B, D = 1000, 32
    key = jax.random.PRNGKey(0)
    kx, kw, kb = jax.random.split(key, 3)

    x = jax.random.normal(kx, (B, D), dtype=jnp.float32)

    # Deterministic params mimicking nn.Linear default init: U(-1/sqrt(D), 1/sqrt(D)).
    bound = 1.0 / (D ** 0.5)
    w = jax.random.uniform(kw, (1, D), minval=-bound, maxval=bound, dtype=jnp.float32)
    b = jax.random.uniform(kb, (1,), minval=-bound, maxval=bound, dtype=jnp.float32)

    out = ffnet0_forward(x, w, b, block_rows=512)
    jax.block_until_ready(out)

    # Reference check in plain JAX (tolerance loosened for the EUP approx reciprocal).
    ref = jax.nn.sigmoid(x @ w.T + b)
    err = float(jnp.max(jnp.abs(out - ref)))
    assert out.shape == (B, 1)
    assert jnp.allclose(out, ref, atol=2e-3, rtol=2e-3), err

    print("KERNEL_OK")
</pallas_src>

<mosaic_0001>
module attributes {stable_mosaic.version = 11 : i64} {
  func.func @ffnet0_kernel(%arg0: i32, %arg1: memref<32x128xf32, #tpu.memory_space<vmem>>, %arg2: memref<128x4xf32, #tpu.memory_space<vmem>>, %arg3: memref<1xf32, #tpu.memory_space<smem>>, %arg4: memref<32x4xf32, #tpu.memory_space<vmem>>) attributes {dimension_semantics = [#tpu.dimension_semantics<parallel>], iteration_bounds = array<i64: 8>, scalar_prefetch = 0 : i64, scratch_operands = 0 : i64, tpu.core_type = #tpu.core_type<tc>, window_params = [{transform_indices = @transform_0, window_bounds = array<i64: 32, 128>}, {pipeline_mode = #tpu.pipeline_mode<synchronous>, transform_indices = @transform_1, window_bounds = array<i64: 128, 4>}, {transform_indices = @transform_2, window_bounds = array<i64: 1>}, {transform_indices = @transform_3, window_bounds = array<i64: 32, 4>}]} {
    %c0 = arith.constant 0 : index
    %c0_0 = arith.constant 0 : index
    %0 = vector.load %arg1[%c0, %c0_0] : memref<32x128xf32, #tpu.memory_space<vmem>>, vector<32x128xf32>
    %c0_1 = arith.constant 0 : index
    %c0_2 = arith.constant 0 : index
    %1 = vector.load %arg2[%c0_1, %c0_2] : memref<128x4xf32, #tpu.memory_space<vmem>>, vector<128x4xf32>
    %cst = arith.constant dense<0.000000e+00> : vector<32x4xf32>
    %2 = tpu.matmul %0, %1, %cst {dimension_numbers = #tpu.dot_dimension_numbers<[1], [0], [0], [1], [0, 0, 1, 1], [], []>} : vector<32x128xf32>, vector<128x4xf32>, vector<32x4xf32> -> vector<32x4xf32>
    %c0_3 = arith.constant 0 : index
    %3 = memref.load %arg3[%c0_3] : memref<1xf32, #tpu.memory_space<smem>>
    %4 = vector.broadcast %3 : f32 to vector<32x4xf32>
    %5 = arith.addf %2, %4 : vector<32x4xf32>
    %cst_4 = arith.constant 0.000000e+00 : f32
    %6 = vector.broadcast %cst_4 : f32 to vector<32x4xf32>
    %7 = arith.subf %6, %5 : vector<32x4xf32>
    %8 = math.exp %7 : vector<32x4xf32>
    %cst_5 = arith.constant 1.000000e+00 : f32
    %9 = vector.broadcast %cst_5 : f32 to vector<32x4xf32>
    %10 = arith.addf %9, %8 : vector<32x4xf32>
    %11 = tpu.reciprocal %10 {approx = true} : vector<32x4xf32> -> vector<32x4xf32>
    %c0_6 = arith.constant 0 : index
    %c0_7 = arith.constant 0 : index
    %12 = vector.load %arg4[%c0_6, %c0_7] : memref<32x4xf32, #tpu.memory_space<vmem>>, vector<32x4xf32>
    tpu.vector_store %arg4[%c0_6, %c0_7], %11 {strides = array<i32>} : memref<32x4xf32, #tpu.memory_space<vmem>>, vector<32x4xf32>,
    return
  }
  func.func @transform_0(%arg0: i32) -> (i32, i32) {
    %c0_i32 = arith.constant 0 : i32
    %c0_i32_0 = arith.constant 0 : i32
    return %arg0, %c0_i32 : i32, i32
  }
  func.func @transform_1(%arg0: i32) -> (i32, i32) {
    %c0_i32 = arith.constant 0 : i32
    %c0_i32_0 = arith.constant 0 : i32
    %c0_i32_1 = arith.constant 0 : i32
    return %c0_i32, %c0_i32_0 : i32, i32
  }
  func.func @transform_2(%arg0: i32) -> i32 {
    %c0_i32 = arith.constant 0 : i32
    %c0_i32_0 = arith.constant 0 : i32
    return %c0_i32 : i32
  }
  func.func @transform_3(%arg0: i32) -> (i32, i32) {
    %c0_i32 = arith.constant 0 : i32
    %c0_i32_0 = arith.constant 0 : i32
    return %arg0, %c0_i32 : i32, i32
  }
}

</mosaic_0001>

<llo_original>
// kernel: tpu_custom_call.1
$region0: #{tpu_custom_call.1}
  #allocation0 [shape = 'u32[]', space=smem, size = 0x4, offset = 0x4, fixed_abs, tag = 'smem constant byte address 0x4 - core index']
  #allocation1 [shape = 'u32[144,128]{1,0:T(1,128)}', space=vmem, size = 0x12000, scoped, tag = 'internal scratch']
  #allocation2 [shape = 'f32[1]{0:T(128)S(6)}', space=smem, size = 0x200, scoped, tag = 'scoped memory for tpu_custom_call.1']
  %s0 = inlined_call_operand.hbm [shape: f32[256,128], index: 0, kind: input, shape index: {}]
  %s1 = inlined_call_operand.vmem [shape: f32[128,4], index: 1, kind: input, shape index: {}]
  %s2 = inlined_call_operand.<no memory space> [shape: f32[1], index: 2, kind: input, shape index: {}]
  %s3 = inlined_call_operand.vmem [shape: f32[256,4], index: 3, kind: output, shape index: {}]
  %s4 = sld [smem:[#allocation0]]
  $region49: #{tpu_custom_call.1} parent=0
    _
  %s6 = ssub.s32 1, %s4
  %s7 = scalar_select 0, %s6, %s4
  %8 = sst [smem:[#allocation2]] %s2
  $region1: #{tpu_custom_call.1} parent=0
    #allocation3 [shape = 'u8[32768]{0}', space=vmem, size = 0x8000, scoped, tag = 'input window, operand 0']
    #allocation4 [shape = 's32[2]{0}', space=sflag, size = 0x8, scoped, tag = 'scoped memory for tpu_custom_call.1']
    %9 = vsyncpa [#allocation4], 0
    %s10 = scalar_lea.sflag [#allocation4], 1
    %11 = vsyncpa %s10, 0
    loop: start=0, step=1, limit=10
    $region2: #{tpu_custom_call.1} parent=1 // loop_pre_header
      _
    $region3: #{tpu_custom_call.1} parent=1 // loop_header
      %s13 = sphi 0, %s17
      %p14 = scmp.ge.s32.totalorder %s13, 10
      %s23 = sphi 0, %s25
      %s26 = sphi 0, %s23
      %s27 = sphi 0, %s26
      %s43 = sphi 0, %s27
      %s47 = sphi 0, %s47
      %s49 = sphi 0, %s47
      %s50 = sphi 0, %s49
      %s64 = sphi 0, %s50
      %s68 = sphi 0, %s68
      %s70 = sphi 0, %s68
      %s71 = sphi 0, %s70
      %s85 = sphi 0, %s71
      %s91 = sphi 0, %s93
      %s94 = sphi 0, %s91
      %s95 = sphi 0, %s94
      %s111 = sphi 0, %s95
    $region4: #{tpu_custom_call.1} parent=1 // loop_header_branch
      %16 = sbr.rel (%p14) target = $region8
    $region5: #{tpu_custom_call.1} parent=1 // loop_body
      %s18 = ssub.s32 %s13, 1
      %s19 = ssub.s32 %s13, 2
      %s20 = sadd.s32 %s13, 1
      %s21 = ssub.s32 %s13, %s20
      %p22 = scmp.eq.s32.totalorder %s21, 0
      %s24 = sadd.s32 %s23, 1
      %s25 = scalar_select %p22, %s23, %s24
      %p28 = pneg %p22
      %p29 = scmp.eq.s32.totalorder %s13, 7
      %p30 = por %p28, %p29
      %p31 = scmp.ne.s32.totalorder %s23, %s26
      %p32 = scmp.eq.s32.totalorder %s13, 0
      %p33 = por %p31, %p32
      %p34 = scmp.ne.s32.totalorder %s23, %s26
      %p35 = scmp.eq.s32.totalorder %s18, 7
      %p36 = por %p34, %p35
      %p37 = scmp.ne.s32.totalorder %s26, %s27
      %p38 = scmp.eq.s32.totalorder %s18, 0
      %p39 = por %p37, %p38
      %p40 = scmp.ne.s32.totalorder %s26, %s27
      %p41 = scmp.eq.s32.totalorder %s19, 7
      %p42 = por %p40, %p41
      %p44 = scmp.ne.s32.totalorder %s27, %s43
      %p45 = scmp.eq.s32.totalorder %s19, 0
      %p46 = por %p44, %p45
      %s48 = sadd.s32 %s47, 1
      %p51 = scmp.eq.s32.totalorder %s13, 7
      %p52 = scmp.ne.s32.totalorder %s47, %s49
      %p53 = scmp.eq.s32.totalorder %s13, 0
      %p54 = por %p52, %p53
      %p55 = scmp.ne.s32.totalorder %s47, %s49
      %p56 = scmp.eq.s32.totalorder %s18, 7
      %p57 = por %p55, %p56
      %p58 = scmp.ne.s32.totalorder %s49, %s50
      %p59 = scmp.eq.s32.totalorder %s18, 0
      %p60 = por %p58, %p59
      %p61 = scmp.ne.s32.totalorder %s49, %s50
      %p62 = scmp.eq.s32.totalorder %s19, 7
      %p63 = por %p61, %p62
      %p65 = scmp.ne.s32.totalorder %s50, %s64
      %p66 = scmp.eq.s32.totalorder %s19, 0
      %p67 = por %p65, %p66
      %s69 = sadd.s32 %s68, 1
      %p72 = scmp.eq.s32.totalorder %s13, 7
      %p73 = scmp.ne.s32.totalorder %s68, %s70
      %p74 = scmp.eq.s32.totalorder %s13, 0
      %p75 = por %p73, %p74
      %p76 = scmp.ne.s32.totalorder %s68, %s70
      %p77 = scmp.eq.s32.totalorder %s18, 7
      %p78 = por %p76, %p77
      %p79 = scmp.ne.s32.totalorder %s70, %s71
      %p80 = scmp.eq.s32.totalorder %s18, 0
      %p81 = por %p79, %p80
      %p82 = scmp.ne.s32.totalorder %s70, %s71
      %p83 = scmp.eq.s32.totalorder %s19, 7
      %p84 = por %p82, %p83
      %p86 = scmp.ne.s32.totalorder %s71, %s85
      %p87 = scmp.eq.s32.totalorder %s19, 0
      %p88 = por %p86, %p87
      %s89 = ssub.s32 %s13, %s20
      %p90 = scmp.eq.s32.totalorder %s89, 0
      %s92 = sadd.s32 %s91, 1
      %s93 = scalar_select %p90, %s91, %s92
      %p96 = pneg %p90
      %p97 = scmp.eq.s32.totalorder %s13, 7
      %p98 = por %p96, %p97
      %p99 = scmp.ne.s32.totalorder %s91, %s94
      %p100 = scmp.eq.s32.totalorder %s13, 0
      %p101 = por %p99, %p100
      %p102 = scmp.ne.s32.totalorder %s91, %s94
      %p103 = scmp.eq.s32.totalorder %s18, 7
      %p104 = por %p102, %p103
      %p105 = scmp.ne.s32.totalorder %s94, %s95
      %p106 = scmp.eq.s32.totalorder %s18, 0
      %p107 = por %p105, %p106
      %p108 = scmp.ne.s32.totalorder %s94, %s95
      %p109 = scmp.eq.s32.totalorder %s19, 7
      %p110 = por %p108, %p109
      %p112 = scmp.ne.s32.totalorder %s95, %s111
      %p113 = scmp.eq.s32.totalorder %s19, 0
      %p114 = por %p112, %p113
      %p115 = scmp.le.s32.totalorder 1, %s13
      %p116 = scmp.lt.s32.totalorder %s13, 9
      %p117 = pnand %p115, %p116
      %p118 = pneg %p117
      // Predicated region
      $region9: #{tpu_custom_call.1} parent=5 // pred_check
        _
      $region10: #{tpu_custom_call.1} parent=5 // pred_check_branch
        %120 = sbr.rel (%p117) target = $region12
      $region11: #{tpu_custom_call.1} parent=5 // pred_region
        %s121 = ssub.s32 %s13, 1
        // Predicated region
        $region13: #{tpu_custom_call.1} parent=11 // pred_check
          %p122 = pneg %p60
        $region14: #{tpu_custom_call.1} parent=11 // pred_check_branch
          %124 = sbr.rel (%p122) target = $region16
        $region15: #{tpu_custom_call.1} parent=11 // pred_region
          _
        $region16: #{tpu_custom_call.1} parent=11 // pred_fallthru
          _
        // Predicated region
        $region17: #{tpu_custom_call.1} parent=11 // pred_check
          %p125 = pneg %p81
        $region18: #{tpu_custom_call.1} parent=11 // pred_check_branch
          %127 = sbr.rel (%p125) target = $region20
        $region19: #{tpu_custom_call.1} parent=11 // pred_region
          _
        $region20: #{tpu_custom_call.1} parent=11 // pred_fallthru
          _
      $region12: #{tpu_custom_call.1} parent=5 // pred_fallthru
        _
      %p128 = scmp.lt.s32.totalorder %s13, 8
      // Predicated region
      $region21: #{tpu_custom_call.1} parent=5 // pred_check
        %p129 = pneg %p128
      $region22: #{tpu_custom_call.1} parent=5 // pred_check_branch
        %131 = sbr.rel (%p129) target = $region24
      $region23: #{tpu_custom_call.1} parent=5 // pred_region
        // Predicated region
        $region25: #{tpu_custom_call.1} parent=23 // pred_check
          %p132 = pneg %p33
        $region26: #{tpu_custom_call.1} parent=23 // pred_check_branch
          %134 = sbr.rel (%p132) target = $region28
        $region27: #{tpu_custom_call.1} parent=23 // pred_region
          %s135 = sand.u32 %s23, 1
          %s136 = scalar_lea.sflag [#allocation4], %s135
          %s137 = sand.u32 %s23, 1
          %s138 = smul.addr %s137, 32
          %s139 = scalar_lea.vmem [#allocation3], %s138
          %s140 = smul.u32 4, %s13
          %s142 = ssub.s32 512, 512
          %143 = vsyncadd %s136, %s142
          %s144 = smul.addr %s140, 128
          %s145 = scalar_lea.hbm %s0, %s144
          %s146 = sshll.u32 %s139, 4
          %s147 = int_to_ptr.vmem [resolvable:$true] %s146
          %152 = dma.hbm_to_vmem [thread:$0]  %s145, 512, %s147, %s136, 128, 128, 8
        $region28: #{tpu_custom_call.1} parent=23 // pred_fallthru
          _
      $region24: #{tpu_custom_call.1} parent=5 // pred_fallthru
        _
      %p153 = scmp.le.s32.totalorder 1, %s13
      %p154 = scmp.lt.s32.totalorder %s13, 9
      %p155 = pnand %p153, %p154
      %p156 = pneg %p155
      // Predicated region
      $region29: #{tpu_custom_call.1} parent=5 // pred_check
        _
      $region30: #{tpu_custom_call.1} parent=5 // pred_check_branch
        %158 = sbr.rel (%p155) target = $region32
      $region31: #{tpu_custom_call.1} parent=5 // pred_region
        %s159 = ssub.s32 %s13, 1
        %s160 = sand.u32 %s26, 1
        %s161 = scalar_lea.sflag [#allocation4], %s160
        %s162 = sand.u32 %s26, 1
        %s163 = smul.addr %s162, 32
        %s164 = scalar_lea.vmem [#allocation3], %s163
        // Predicated region
        $region33: #{tpu_custom_call.1} parent=31 // pred_check
          %p165 = pneg %p39
        $region34: #{tpu_custom_call.1} parent=31 // pred_check_branch
          %167 = sbr.rel (%p165) target = $region36
        $region35: #{tpu_custom_call.1} parent=31 // pred_region
          %168 = dma.done %s161, 512
        $region36: #{tpu_custom_call.1} parent=31 // pred_fallthru
          _
        %s169 = sand.u32 %s26, 1
        %s170 = scalar_lea.sflag [#allocation4], %s169
        %s171 = sand.u32 %s26, 1
        %s172 = smul.addr %s171, 32
        %s173 = scalar_lea.vmem [#allocation3], %s172
        %p174 = pneg %p39
        %p175 = pneg %p36
        %p176 = pneg %p60
        %p177 = pneg %p57
        %p178 = pneg %p81
        %p179 = pneg %p78
        %p180 = pneg %p107
        %p181 = pneg %p104
        %s182 = smul.u32 4, %s18
        %p183 = scmp.lt.s32.totalorder %s182, 31
        %s184 = scalar_select %p183, %s182, 31
        %s185 = smul.addr %s184, 8
        %s186 = scalar_lea.vmem %s3, %s185
        %s187 = smul.u32 4, %s18
        %s188 = smul.u32 4, %s18
        %p189 = scmp.lt.s32.totalorder %s188, 31
        %s190 = scalar_select %p189, %s188, 31
        %s191 = smul.addr %s190, 8
        %s192 = scalar_lea.vmem %s3, %s191
        %s193 = smul.u32 4, %s18
        %v194 = vld [vmem:[%s164] sm:$0xff]
        %v195 = vld [vmem:[%s164 + $0x8] sm:$0xff]
        %v196 = vld [vmem:[%s164 + $0x10] sm:$0xff]
        %v197 = vld [vmem:[%s164 + $0x18] sm:$0xff]
        %v198 = vld [vmem:[%s1] sm:$0xff]
        %v199 = vld [vmem:[%s1 + $0x8] sm:$0xff]
        %v200 = vld [vmem:[%s1 + $0x10] sm:$0xff]
        %v201 = vld [vmem:[%s1 + $0x18] sm:$0xff]
        %v202 = vld [vmem:[%s1 + $0x20] sm:$0xff]
        %v203 = vld [vmem:[%s1 + $0x28] sm:$0xff]
        %v204 = vld [vmem:[%s1 + $0x30] sm:$0xff]
        %v205 = vld [vmem:[%s1 + $0x38] sm:$0xff]
        %v206 = vld [vmem:[%s1 + $0x40] sm:$0xff]
        %v207 = vld [vmem:[%s1 + $0x48] sm:$0xff]
        %v208 = vld [vmem:[%s1 + $0x50] sm:$0xff]
        %v209 = vld [vmem:[%s1 + $0x58] sm:$0xff]
        %v210 = vld [vmem:[%s1 + $0x60] sm:$0xff]
        %v211 = vld [vmem:[%s1 + $0x68] sm:$0xff]
        %v212 = vld [vmem:[%s1 + $0x70] sm:$0xff]
        %v213 = vld [vmem:[%s1 + $0x78] sm:$0xff]
        %s214 = sld [smem:[#allocation2]]
        %v215 = vstv %s214
        %216 = vmatprep.subr.mxu0 0.0
        %217 = vmatpush1.msra.mxu0 %v198
        %218 = vmatprep.subr.mxu0 0.0
        %219 = vmatpush1.msra.mxu0 %v199
        %220 = vmatprep.subr.mxu0 0.0
        %221 = vmatpush1.msra.mxu0 %v200
        %222 = vmatprep.subr.mxu0 0.0
        %223 = vmatpush1.msra.mxu0 %v201
        %224 = vmatprep.subr.mxu0 0.0
        %225 = vmatpush1.msra.mxu0 %v202
        %226 = vmatprep.subr.mxu0 0.0
        %227 = vmatpush1.msra.mxu0 %v203
        %228 = vmatprep.subr.mxu0 0.0
        %229 = vmatpush1.msra.mxu0 %v204
        %230 = vmatprep.subr.mxu0 0.0
        %231 = vmatpush1.msra.mxu0 %v205
        %232 = vmatprep.subr.mxu0 0.0
        %233 = vmatpush1.msra.mxu0 %v206
        %234 = vmatprep.subr.mxu0 0.0
        %235 = vmatpush1.msra.mxu0 %v207
        %236 = vmatprep.subr.mxu0 0.0
        %237 = vmatpush1.msra.mxu0 %v208
        %238 = vmatprep.subr.mxu0 0.0
        %239 = vmatpush1.msra.mxu0 %v209
        %240 = vmatprep.subr.mxu0 0.0
        %241 = vmatpush1.msra.mxu0 %v210
        %242 = vmatprep.subr.mxu0 0.0
        %243 = vmatpush1.msra.mxu0 %v211
        %244 = vmatprep.subr.mxu0 0.0
        %245 = vmatpush1.msra.mxu0 %v212
        %246 = vmatprep.subr.mxu0 0.0
        %247 = vmatpush1.msra.mxu0 %v213
        %248 = vmatprep.subr.mxu0 0.0
        %249 = vmatpush1.msra.mxu0 0.0
        %250 = vmatprep.subr.mxu0 0.0
        %251 = vmatpush1.msra.mxu0 0.0
        %252 = vmatprep.subr.mxu0 0.0
        %253 = vmatpush1.msra.mxu0 0.0
        %254 = vmatprep.subr.mxu0 0.0
        %255 = vmatpush1.msra.mxu0 0.0
        %256 = vmatprep.subr.mxu0 0.0
        %257 = vmatpush1.msra.mxu0 0.0
        %258 = vmatprep.subr.mxu0 0.0
        %259 = vmatpush1.msra.mxu0 0.0
        %260 = vmatprep.subr.mxu0 0.0
        %261 = vmatpush1.msra.mxu0 0.0
        %262 = vmatprep.subr.mxu0 0.0
        %263 = vmatpush1.msra.mxu0 0.0
        %264 = vmatprep.subr.mxu0 0.0
        %265 = vmatpush1.msra.mxu0 0.0
        %266 = vmatprep.subr.mxu0 0.0
        %267 = vmatpush1.msra.mxu0 0.0
        %268 = vmatprep.subr.mxu0 0.0
        %269 = vmatpush1.msra.mxu0 0.0
        %270 = vmatprep.subr.mxu0 0.0
        %271 = vmatpush1.msra.mxu0 0.0
        %272 = vmatprep.subr.mxu0 0.0
        %273 = vmatpush1.msra.mxu0 0.0
        %274 = vmatprep.subr.mxu0 0.0
        %275 = vmatpush1.msra.mxu0 0.0
        %276 = vmatprep.subr.mxu0 0.0
        %277 = vmatpush1.msra.mxu0 0.0
        %278 = vmatprep.subr.mxu0 0.0
        %279 = vmatpush1.msra.mxu0 0.0
        %280 = vmatprep.mubr.f32.mxu0 0.0
        %281 = vmatmul.mubr.f32.gmra.mrb[0].mxu0 %v194
        %v282 = vpop.f32.mrb[0].mxu0
        %v283 = vadd.f32 %v215, %v282
        %v284 = vpop.f32.mrb[0].mxu0
        %285 = vmatprep.mubr.f32.mxu0 0.0
        %286 = vmatmul.mubr.f32.gmra.mrb[0].mxu0 %v195
        %v287 = vpop.f32.mrb[0].mxu0
        %v288 = vadd.f32 %v215, %v287
        %v289 = vpop.f32.mrb[0].mxu0
        %290 = vmatprep.mubr.f32.mxu0 0.0
        %291 = vmatmul.mubr.f32.gmra.mrb[0].mxu0 %v196
        %v292 = vpop.f32.mrb[0].mxu0
        %v293 = vadd.f32 %v215, %v292
        %v294 = vpop.f32.mrb[0].mxu0
        %295 = vmatprep.mubr.f32.mxu0 0.0
        %296 = vmatmul.mubr.f32.gmra.mrb[0].mxu0 %v197
        %v297 = vpop.f32.mrb[0].mxu0
        %v298 = vadd.f32 %v215, %v297
        %v299 = vpop.f32.mrb[0].mxu0
        %300 = vdwg.mxu0
        %v301 = vsub.f32 0.0, %v283
        %v302 = vsub.f32 0.0, %v288
        %v303 = vsub.f32 0.0, %v293
        %v304 = vsub.f32 0.0, %v298
        %v305 = vmul.f32 %v301, 1.442695
        %v306 = vpow.pop %v305
        %v307 = vmul.f32 %v302, 1.442695
        %v308 = vpow.pop %v307
        %v309 = vmul.f32 %v303, 1.442695
        %v310 = vpow.pop %v309
        %v311 = vmul.f32 %v304, 1.442695
        %v312 = vpow.pop %v311
        %v313 = vadd.f32 %v306, 1.0
        %v314 = vadd.f32 %v308, 1.0
        %v315 = vadd.f32 %v310, 1.0
        %v316 = vadd.f32 %v312, 1.0
        %v317 = vrcp.pop %v313
        %v318 = vrcp.pop %v314
        %v319 = vrcp.pop %v315
        %v320 = vrcp.pop %v316
        %vm321 = vcmask 31744
        %322 = vst.msk [vmem:[%s192] sm:$0xff] %vm321, %v317
        %323 = vst.msk [vmem:[%s192 + $0x8] sm:$0xff] %vm321, %v318
        %324 = vst.msk [vmem:[%s192 + $0x10] sm:$0xff] %vm321, %v319
        %325 = vst.msk [vmem:[%s192 + $0x18] sm:$0xff] %vm321, %v320
        %s326 = smul.u32 4, %s18
        %p327 = scmp.lt.s32.totalorder %s326, 31
        %s328 = scalar_select %p327, %s326, 31
        %s329 = smul.addr %s328, 8
        %s330 = scalar_lea.vmem %s3, %s329
        // Predicated region
        $region37: #{tpu_custom_call.1} parent=31 // pred_check
          %p331 = pneg %p104
        $region38: #{tpu_custom_call.1} parent=31 // pred_check_branch
          %333 = sbr.rel (%p331) target = $region40
        $region39: #{tpu_custom_call.1} parent=31 // pred_region
          %s334 = smul.u32 4, %s18
        $region40: #{tpu_custom_call.1} parent=31 // pred_fallthru
          _
      $region32: #{tpu_custom_call.1} parent=5 // pred_fallthru
        _
      %p335 = scmp.le.s32.totalorder 2, %s13
      // Predicated region
      $region41: #{tpu_custom_call.1} parent=5 // pred_check
        %p336 = pneg %p335
      $region42: #{tpu_custom_call.1} parent=5 // pred_check_branch
        %338 = sbr.rel (%p336) target = $region44
      $region43: #{tpu_custom_call.1} parent=5 // pred_region
        %s339 = ssub.s32 %s13, 2
        // Predicated region
        $region45: #{tpu_custom_call.1} parent=43 // pred_check
          %p340 = pneg %p110
        $region46: #{tpu_custom_call.1} parent=43 // pred_check_branch
          %342 = sbr.rel (%p340) target = $region48
        $region47: #{tpu_custom_call.1} parent=43 // pred_region
          %s343 = smul.u32 4, %s19
          %p344 = scmp.lt.s32.totalorder %s343, 31
          %s345 = scalar_select %p344, %s343, 31
          %s346 = smul.addr %s345, 8
          %s347 = scalar_lea.vmem %s3, %s346
        $region48: #{tpu_custom_call.1} parent=43 // pred_fallthru
          _
      $region44: #{tpu_custom_call.1} parent=5 // pred_fallthru
        _
    $region6: #{tpu_custom_call.1} parent=1 // loop_footer
      %s17 = sadd.s32 1, %s13
    $region7: #{tpu_custom_call.1} parent=1 // loop_footer_branch
      %12 = sbr.rel target = $region3
    $region8: #{tpu_custom_call.1} parent=1 // loop_exit
      _
    %348 = vsyncpa [#allocation4], 1
    %s349 = scalar_lea.sflag [#allocation4], 1
    %350 = vsyncpa %s349, 1

</llo_original>
